<compile_context>
chip_gen: v5e
topology: v5e:2x2
jax: 0.10.0
libtpu: 0.0.40
codegen_flags: <defaults>
</compile_context>

<pallas_src>
import numpy as np
import jax
import jax.numpy as jnp
from jax.experimental import pallas as pl
from jax.experimental.pallas import tpu as pltpu


def make_vertical_encoding_table(hidden_dim: int, max_length: int = 60,
                                 dtype=jnp.float32) -> jnp.ndarray:
    """Deterministic sinusoidal table, identical to the PyTorch __init__.

    Built once in the model dtype so the forward path never re-casts it.
    """
    position = np.arange(0, max_length, dtype=np.float32)[:, None]            # (L, 1)
    div_term = 1.0 / (10000.0 ** (np.arange(0, hidden_dim, 2, dtype=np.float32)
                                  * 2.0 / hidden_dim))                        # (ceil(H/2),)
    pe = np.zeros((max_length, hidden_dim), dtype=np.float32)
    pe[:, 0::2] = np.sin(position * div_term)
    pe[:, 1::2] = np.cos(position * div_term)
    return jnp.asarray(pe[None, :, :], dtype=dtype)                           # (1, L_max, H)


def _add_pe_kernel(x_ref, pe_ref, o_ref):
    # x_ref / o_ref: (bt, ft) tile of the flattened (B, L*H) activations.
    # pe_ref:        (1, ft) column slab of the flattened PE row, broadcast
    #                over the bt rows (in-register, hidden under HBM traffic).
    o_ref[...] = (x_ref[...] + pe_ref[...]).astype(o_ref.dtype)


def _choose_tiles(num_rows: int, row_elems: int, itemsize: int,
                  target_bytes: int = 2 << 20):
    """Pick (bt, ft): ~target_bytes per block, dtype-aware sublane row count,
    lane dim a multiple of 128 (or the full extent).

    ~2 MiB blocks measure ~85% of HBM roofline and keep the double-buffered
    VMEM footprint (2 x bt*ft for x, 2 x bt*ft for out, 2 x ft for pe, all
    * itemsize ~= 8.5 MiB worst case) under v5e's 16 MiB default scoped VMEM
    and far under v7x's 64 MiB physical VMEM.
    """
    sub = max(8, 32 // itemsize)        # min sublane rows: f32 -> 8, bf16 -> 16, int8/fp8 -> 32
    row_bytes = row_elems * itemsize

    if sub * row_bytes <= target_bytes:
        # A minimum-height block of full rows fits the budget: keep the column
        # axis at full extent and stack as many rows as the budget allows.
        ft = row_elems                                   # full extent (no 128-divisibility needed)
        bt = (target_bytes // row_bytes // sub) * sub    # >= sub by the branch condition
        if bt >= num_rows:
            bt = num_rows                                # full extent: single row block
    else:
        # Even sub rows exceed the budget: tile the long F axis instead.
        bt = num_rows if num_rows < sub else sub
        ft = (target_bytes // (bt * itemsize) // 128) * 128
        ft = max(128, min(ft, row_elems))                # multiple of 128, < F here
    return bt, ft


def vertical_encoding_forward(x: jnp.ndarray, pe: jnp.ndarray) -> jnp.ndarray:
    """x: (B, L, H); pe: (1, max_length, H). Returns x + pe[:, :L, :]."""
    B, L, H = x.shape
    F = L * H

    # Free, contiguous reshapes: lane-dense 2-D views.
    x2d = x.reshape(B, F)
    pe_slab = pe[:, :L, :]
    if pe_slab.dtype != x.dtype:
        pe_slab = pe_slab.astype(x.dtype)   # no-op when the table was built in the model dtype
    pe2d = pe_slab.reshape(1, F)

    itemsize = jnp.dtype(x.dtype).itemsize
    bt, ft = _choose_tiles(B, F, itemsize)
    grid = (pl.cdiv(B, bt), pl.cdiv(F, ft))

    out2d = pl.pallas_call(
        _add_pe_kernel,
        out_shape=jax.ShapeDtypeStruct((B, F), x.dtype),
        grid=grid,
        in_specs=[
            pl.BlockSpec((bt, ft), lambda r, c: (r, c)),   # x: (row, col) tile
            pl.BlockSpec((1, ft), lambda r, c: (0, c)),    # pe: column slab, row-invariant
        ],
        out_specs=pl.BlockSpec((bt, ft), lambda r, c: (r, c)),
        input_output_aliases={0: 0},   # output may reuse x's HBM buffer when donated
        cost_estimate=pl.CostEstimate(
            flops=B * F,
            transcendentals=0,
            bytes_accessed=(2 * B * F + F) * itemsize),
        compiler_params=pltpu.CompilerParams(
            dimension_semantics=("parallel", "parallel")),  # both axes shardable (v7x megacore)
    )(x2d, pe2d)

    return out2d.reshape(B, L, H)


if __name__ == "__main__":
    B, L, H = 2, 8, 32
    MAX_LEN = 60

    key = jax.random.PRNGKey(0)
    x = jax.random.normal(key, (B, L, H), dtype=jnp.float32)

    pe = make_vertical_encoding_table(H, MAX_LEN, dtype=jnp.float32)

    # Reference in plain JAX (same math as the PyTorch forward), computed
    # before the kernel so the aliasing hint cannot affect the check.
    ref = x + pe[:, :L, :]

    out = jax.block_until_ready(vertical_encoding_forward(x, pe))

    np.testing.assert_allclose(np.asarray(out), np.asarray(ref), rtol=1e-6, atol=1e-6)
    print("KERNEL_OK")
</pallas_src>

<mosaic_0001>
module attributes {stable_mosaic.version = 11 : i64} {
  func.func @_add_pe_kernel(%arg0: i32, %arg1: i32, %arg2: memref<2x256xf32, #tpu.memory_space<vmem>>, %arg3: memref<1x256xf32, #tpu.memory_space<vmem>>, %arg4: memref<2x256xf32, #tpu.memory_space<vmem>>) attributes {dimension_semantics = [#tpu.dimension_semantics<parallel>, #tpu.dimension_semantics<parallel>], iteration_bounds = array<i64: 1, 1>, scalar_prefetch = 0 : i64, scratch_operands = 0 : i64, tpu.core_type = #tpu.core_type<tc>, window_params = [{transform_indices = @transform_0, window_bounds = array<i64: 2, 256>}, {transform_indices = @transform_1, window_bounds = array<i64: 1, 256>}, {transform_indices = @transform_2, window_bounds = array<i64: 2, 256>}]} {
    %c0 = arith.constant 0 : index
    %c0_0 = arith.constant 0 : index
    %0 = vector.load %arg2[%c0, %c0_0] : memref<2x256xf32, #tpu.memory_space<vmem>>, vector<2x256xf32>
    %c0_1 = arith.constant 0 : index
    %c0_2 = arith.constant 0 : index
    %1 = vector.load %arg3[%c0_1, %c0_2] : memref<1x256xf32, #tpu.memory_space<vmem>>, vector<1x256xf32>
    %2 = vector.broadcast %1 : vector<1x256xf32> to vector<2x256xf32>
    %3 = arith.addf %0, %2 : vector<2x256xf32>
    %c0_3 = arith.constant 0 : index
    %c0_4 = arith.constant 0 : index
    %4 = vector.load %arg4[%c0_3, %c0_4] : memref<2x256xf32, #tpu.memory_space<vmem>>, vector<2x256xf32>
    tpu.vector_store %arg4[%c0_3, %c0_4], %3 {strides = array<i32>} : memref<2x256xf32, #tpu.memory_space<vmem>>, vector<2x256xf32>,
    return
  }
  func.func @transform_0(%arg0: i32, %arg1: i32) -> (i32, i32) {
    %c0_i32 = arith.constant 0 : i32
    return %arg0, %arg1 : i32, i32
  }
  func.func @transform_1(%arg0: i32, %arg1: i32) -> (i32, i32) {
    %c0_i32 = arith.constant 0 : i32
    %c0_i32_0 = arith.constant 0 : i32
    return %c0_i32, %arg1 : i32, i32
  }
  func.func @transform_2(%arg0: i32, %arg1: i32) -> (i32, i32) {
    %c0_i32 = arith.constant 0 : i32
    return %arg0, %arg1 : i32, i32
  }
}

</mosaic_0001>

<llo_original>
// kernel: tpu_custom_call.1
$region0: #{tpu_custom_call.1}
  #allocation0 [shape = 'u32[]', space=smem, size = 0x4, offset = 0x4, fixed_abs, tag = 'smem constant byte address 0x4 - core index']
  #allocation1 [shape = 'u32[72,128]{1,0:T(1,128)}', space=vmem, size = 0x9000, scoped, tag = 'internal scratch']
  %s0 = inlined_call_operand.hbm [shape: f32[2,256], index: 0, kind: input, shape index: {}, may-alias: {0,2}]
  %s1 = inlined_call_operand.vmem [shape: f32[1,256], index: 1, kind: input, shape index: {}]
  %s2 = inlined_call_operand.hbm [shape: f32[2,256], index: 2, kind: output, shape index: {}, may-alias: {0,2}]
  %s3 = sld [smem:[#allocation0]]
  $region22: #{tpu_custom_call.1} parent=0
    _
  %s5 = ssub.s32 1, %s3
  %s6 = scalar_select 0, %s5, %s3
  $region1: #{tpu_custom_call.1} parent=0
    #allocation2 [shape = 'u8[2048]{0}', space=vmem, size = 0x800, scoped, tag = 'input window, operand 0, single buffered']
    #allocation3 [shape = 's32[1]{0}', space=sflag, size = 0x4, scoped, tag = 'scoped memory for tpu_custom_call.1']
    #allocation4 [shape = 's32[1]{0}', space=sflag, size = 0x4, scoped, tag = 'scoped memory for tpu_custom_call.1']
    #allocation5 [shape = 'u8[2048]{0}', space=vmem, size = 0x800, scoped, tag = 'output window, operand 0, single buffered']
    %7 = vsyncpa [#allocation3], 0
    %8 = vsyncpa [#allocation4], 0
    // Predicated region
    $region2: #{tpu_custom_call.1} parent=1 // pred_check
      _
    $region3: #{tpu_custom_call.1} parent=1 // pred_check_branch
      %10 = sbr.rel (0) target = $region5
    $region4: #{tpu_custom_call.1} parent=1 // pred_region
      %12 = vsyncadd [#allocation3], 0
      %s14 = sshll.u32 %s0, 4
      %s15 = int_to_ptr.hbm [resolvable:$true] %s14
      %s16 = sshll.u32 [#allocation2], 4
      %s17 = int_to_ptr.vmem [resolvable:$true] %s16
      %19 = dma.hbm_to_vmem [thread:$0]  %s15, 64, %s17, [#allocation3]
    $region5: #{tpu_custom_call.1} parent=1 // pred_fallthru
      _
    // Predicated region
    $region6: #{tpu_custom_call.1} parent=1 // pred_check
      _
    $region7: #{tpu_custom_call.1} parent=1 // pred_check_branch
      %21 = sbr.rel (0) target = $region9
    $region8: #{tpu_custom_call.1} parent=1 // pred_region
      _
    $region9: #{tpu_custom_call.1} parent=1 // pred_fallthru
      _
    // Predicated region
    $region10: #{tpu_custom_call.1} parent=1 // pred_check
      _
    $region11: #{tpu_custom_call.1} parent=1 // pred_check_branch
      %23 = sbr.rel (0) target = $region13
    $region12: #{tpu_custom_call.1} parent=1 // pred_region
      %25 = dma.done [#allocation3], 64
    $region13: #{tpu_custom_call.1} parent=1 // pred_fallthru
      _
    %v26 = vld [vmem:[#allocation2] sm:$0xf]
    %v27 = vld [vmem:[%s1] sm:$0x3]
    %v29 = vperm.slane %v27, 0
    %v30 = vperm.slane %v27, 1
    %v31 = vrot.slane %v30, 6
    %vm32 = vcmask 1041408
    %v33 = vsel %vm32, %v29, %v31
    %v35 = vadd.f32 %v26, %v33
    %36 = vst [vmem:[#allocation5] sm:$0xf] %v35
    // Predicated region
    $region14: #{tpu_custom_call.1} parent=1 // pred_check
      _
    $region15: #{tpu_custom_call.1} parent=1 // pred_check_branch
      %38 = sbr.rel (0) target = $region17
    $region16: #{tpu_custom_call.1} parent=1 // pred_region
      %40 = vsyncadd [#allocation4], 0
      %s42 = sshll.u32 [#allocation5], 4
      %s43 = int_to_ptr.vmem [resolvable:$true] %s42
      %s44 = sshll.u32 %s2, 4
      %s45 = int_to_ptr.hbm [resolvable:$true] %s44
      %47 = dma.vmem_to_hbm [thread:$0]  %s43, 64, %s45, [#allocation4]
    $region17: #{tpu_custom_call.1} parent=1 // pred_fallthru
      _
    // Predicated region
    $region18: #{tpu_custom_call.1} parent=1 // pred_check
      _
    $region19: #{tpu_custom_call.1} parent=1 // pred_check_branch
      %49 = sbr.rel (0) target = $region21
    $region20: #{tpu_custom_call.1} parent=1 // pred_region
      %51 = dma.done [#allocation4], 64
    $region21: #{tpu_custom_call.1} parent=1 // pred_fallthru
      _
    %52 = vsyncpa [#allocation3], 1
    %53 = vsyncpa [#allocation4], 1

</llo_original>
